<compile_context>
chip_gen: v6e
topology: v6e:2x2x1
jax: 0.10.0
libtpu: 0.0.40
codegen_flags: <defaults>
</compile_context>

<pallas_src>
import math

import jax
import jax.numpy as jnp
from jax.experimental import pallas as pl
from jax.experimental.pallas import tpu as pltpu

BN_EPS = 1e-5


def _generic_net_kernel(eps_ref, x_ref, gamma_ref, beta_ref, w_ref, b_ref,
                        y_ref, z0_ref, z1_ref, z2_ref):
    k = pl.program_id(0)
    eps = eps_ref[0]

    x = x_ref[...]                                    # (B, tf)
    mean = jnp.mean(x, axis=0, keepdims=True)         # (1, tf)
    xc = x - mean                                     # reused for var and z0
    var = jnp.mean(xc * xc, axis=0, keepdims=True)    # biased (unbiased=False)
    inv_std = jax.lax.rsqrt(var + BN_EPS)             # (1, tf)

    a = inv_std * gamma_ref[...]                      # (1, tf) fused scale row
    z0 = xc * a + beta_ref[...]                       # (B, tf)
    d = eps * jnp.abs(a)                              # (1, tf) IBP half-width row

    z0_ref[...] = z0
    z1_ref[...] = z0 + d
    z2_ref[...] = z0 - d

    # y = z0 @ Wout^T + b, accumulated directly in the resident y output block.
    contrib = jnp.dot(z0, w_ref[...], preferred_element_type=jnp.float32)

    @pl.when(k == 0)
    def _():
        y_ref[...] = contrib + b_ref[...]

    @pl.when(k != 0)
    def _():
        y_ref[...] = y_ref[...] + contrib


def _round_up(n, m):
    return ((n + m - 1) // m) * m


def _vmem_budget_bytes():
    cap = 128 * 1024 * 1024
    try:
        info = pltpu.get_tpu_info()
        cap = int(getattr(info, "vmem_capacity_bytes", cap))
    except Exception:
        pass
    if cap <= 64 * 1024 * 1024:                      # v7x-class (64 MiB physical)
        return (3 * cap) // 4                        # ~48 MiB
    return min(100 * 1024 * 1024, (3 * cap) // 4)    # v5e/v6e (128 MiB physical)


def generic_net_forward(x, eps, gamma, beta, w_out_t, b_out, *, max_feature_tile=None):
    """x:(B,F), gamma/beta:(1,F), w_out_t:(F,O) (PyTorch (O,F) weight pre-transposed), b_out:(1,O)."""
    B, F = x.shape
    O = w_out_t.shape[1]

    budget = _vmem_budget_bytes()
    tile_budget = (4 * budget) // 5                  # headroom for compiler scratch

    def step_bytes(tf):
        # double-buffered: x tile + 3 z tiles + gamma/beta rows + W tile; resident y + bias
        return 4 * (2 * (4 * B * tf + 2 * tf + tf * O) + 2 * O + B * O)

    cap = None if max_feature_tile is None else max(128, int(max_feature_tile))

    single_ok = step_bytes(F) <= tile_budget and (cap is None or F <= cap)
    if single_ok:
        tf, F_pad = F, F                             # whole feature axis, grid of 1
    else:
        limit = _round_up(F, 128)
        if cap is not None:
            limit = min(limit, (cap // 128) * 128)
        limit = max(limit, 128)
        tf = 128
        while tf + 128 <= limit and step_bytes(tf + 128) <= tile_budget:
            tf += 128
        F_pad = _round_up(F, tf)

    x_p = x.astype(jnp.float32)
    gamma_p = gamma.astype(jnp.float32)
    beta_p = beta.astype(jnp.float32)
    w_p = w_out_t.astype(jnp.float32)
    b_p = b_out.astype(jnp.float32)

    needs_pad = F_pad != F
    if needs_pad:
        pf = F_pad - F
        x_p = jnp.pad(x_p, ((0, 0), (0, pf)))
        gamma_p = jnp.pad(gamma_p, ((0, 0), (0, pf)))
        beta_p = jnp.pad(beta_p, ((0, 0), (0, pf)))
        w_p = jnp.pad(w_p, ((0, pf), (0, 0)))

    eps_arr = jnp.full((1,), eps, dtype=jnp.float32)

    grid = (F_pad // tf,)

    out_shapes = (
        jax.ShapeDtypeStruct((B, O), jnp.float32),       # y
        jax.ShapeDtypeStruct((B, F_pad), jnp.float32),   # z0
        jax.ShapeDtypeStruct((B, F_pad), jnp.float32),   # z1
        jax.ShapeDtypeStruct((B, F_pad), jnp.float32),   # z2
    )

    cost = pl.CostEstimate(
        flops=2 * B * F_pad * O,
        transcendentals=0,
        bytes_accessed=4 * (4 * B * F_pad + F_pad * O + 2 * F_pad + B * O + O),
    )

    y, z0, z1, z2 = pl.pallas_call(
        _generic_net_kernel,
        out_shape=out_shapes,
        grid=grid,
        in_specs=[
            pl.BlockSpec(memory_space=pltpu.MemorySpace.SMEM),   # eps scalar
            pl.BlockSpec((B, tf), lambda k: (0, k)),             # x feature tile
            pl.BlockSpec((1, tf), lambda k: (0, k)),             # gamma
            pl.BlockSpec((1, tf), lambda k: (0, k)),             # beta
            pl.BlockSpec((tf, O), lambda k: (k, 0)),             # Wout (F, O) tile
            pl.BlockSpec((1, O), lambda k: (0, 0)),              # Wout bias
        ],
        out_specs=(
            pl.BlockSpec((B, O), lambda k: (0, 0)),              # y (resident accumulator)
            pl.BlockSpec((B, tf), lambda k: (0, k)),             # z0
            pl.BlockSpec((B, tf), lambda k: (0, k)),             # z1
            pl.BlockSpec((B, tf), lambda k: (0, k)),             # z2
        ),
        compiler_params=pltpu.CompilerParams(
            dimension_semantics=("arbitrary",),                  # y reduction over F tiles
            vmem_limit_bytes=int(budget),
        ),
        cost_estimate=cost,
    )(eps_arr, x_p, gamma_p, beta_p, w_p, b_p)

    if needs_pad:
        z0, z1, z2 = z0[:, :F], z1[:, :F], z2[:, :F]
    return y, (z0, z1, z2)


def generic_net_reference(x, eps, gamma, beta, w_out_t, b_out):
    mean = jnp.mean(x, axis=0, keepdims=True)
    var = jnp.mean((x - mean) ** 2, axis=0, keepdims=True)
    inv_std = jax.lax.rsqrt(var + BN_EPS)
    n0 = (x - mean) * inv_std
    n1 = (x + eps - mean) * inv_std
    n2 = (x - eps - mean) * inv_std
    z0 = n0 * gamma + beta
    g_plus = jnp.where(gamma > 0, gamma, 0.0)
    g_minus = jnp.where(gamma <= 0, gamma, 0.0)
    z1 = n1 * g_plus + n2 * g_minus + beta
    z2 = n1 * g_minus + n2 * g_plus + beta
    y = z0 @ w_out_t + b_out
    return y, (z0, z1, z2)


def _run_case(B, F, O, eps, key, max_feature_tile=None):
    kx, kg, kb, kw, kbo = jax.random.split(key, 5)
    x = jax.random.normal(kx, (B, F), dtype=jnp.float32)
    # BN gamma drawn with mixed signs to exercise the w_plus / w_minus IBP branch;
    # Wout uses GenericNet.ibp_init-style scale.
    gamma = jax.random.normal(kg, (1, F), dtype=jnp.float32)
    beta = 0.1 * jax.random.normal(kb, (1, F), dtype=jnp.float32)
    std = math.sqrt(2 * math.pi) / F
    w_out = std * jax.random.normal(kw, (O, F), dtype=jnp.float32)   # PyTorch layout (O, F)
    w_out_t = w_out.T                                                # (F, O) for the kernel
    b_out = 0.01 * jax.random.normal(kbo, (1, O), dtype=jnp.float32)

    y, (z0, z1, z2) = generic_net_forward(x, eps, gamma, beta, w_out_t, b_out,
                                          max_feature_tile=max_feature_tile)
    jax.block_until_ready((y, z0, z1, z2))

    y_r, (z0_r, z1_r, z2_r) = generic_net_reference(x, eps, gamma, beta, w_out_t, b_out)
    assert jnp.allclose(y, y_r, rtol=1e-5, atol=1e-5), ("y", B, F, O)
    assert jnp.allclose(z0, z0_r, rtol=1e-5, atol=1e-5), ("z0", B, F, O)
    assert jnp.allclose(z1, z1_r, rtol=1e-5, atol=1e-5), ("z1", B, F, O)
    assert jnp.allclose(z2, z2_r, rtol=1e-5, atol=1e-5), ("z2", B, F, O)


if __name__ == "__main__":
    key = jax.random.PRNGKey(0)
    # Small shape consistent with the module: single full-dim block, no padding, grid=(1,).
    _run_case(8, 32, 16, 0.1, jax.random.fold_in(key, 0))
    # Medium F: still a single 640-wide block (no more 128-wide tile collapse).
    _run_case(16, 640, 24, 0.05, jax.random.fold_in(key, 1))
    # Force the multi-tile path (capped tile) to exercise the resident-y accumulator
    # across the "arbitrary" grid axis and the F-padding path.
    _run_case(16, 640, 24, 0.05, jax.random.fold_in(key, 2), max_feature_tile=256)
    _run_case(8, 300, 24, 0.2, jax.random.fold_in(key, 3), max_feature_tile=128)
    print("KERNEL_OK")
</pallas_src>

<mosaic_0001>
module attributes {stable_mosaic.version = 11 : i64} {
  func.func @_generic_net_kernel(%arg0: i32, %arg1: memref<1xf32, #tpu.memory_space<smem>>, %arg2: memref<8x32xf32, #tpu.memory_space<vmem>>, %arg3: memref<1x32xf32, #tpu.memory_space<vmem>>, %arg4: memref<1x32xf32, #tpu.memory_space<vmem>>, %arg5: memref<32x16xf32, #tpu.memory_space<vmem>>, %arg6: memref<1x16xf32, #tpu.memory_space<vmem>>, %arg7: memref<8x16xf32, #tpu.memory_space<vmem>>, %arg8: memref<8x32xf32, #tpu.memory_space<vmem>>, %arg9: memref<8x32xf32, #tpu.memory_space<vmem>>, %arg10: memref<8x32xf32, #tpu.memory_space<vmem>>) attributes {dimension_semantics = [#tpu.dimension_semantics<arbitrary>], iteration_bounds = array<i64: 1>, scalar_prefetch = 0 : i64, scratch_operands = 0 : i64, tpu.core_type = #tpu.core_type<tc>, window_params = [{transform_indices = @transform_0, window_bounds = array<i64: 1>}, {transform_indices = @transform_1, window_bounds = array<i64: 8, 32>}, {transform_indices = @transform_2, window_bounds = array<i64: 1, 32>}, {transform_indices = @transform_3, window_bounds = array<i64: 1, 32>}, {transform_indices = @transform_4, window_bounds = array<i64: 32, 16>}, {pipeline_mode = #tpu.pipeline_mode<synchronous>, transform_indices = @transform_5, window_bounds = array<i64: 1, 16>}, {pipeline_mode = #tpu.pipeline_mode<synchronous>, transform_indices = @transform_6, window_bounds = array<i64: 8, 16>}, {transform_indices = @transform_7, window_bounds = array<i64: 8, 32>}, {transform_indices = @transform_8, window_bounds = array<i64: 8, 32>}, {transform_indices = @transform_9, window_bounds = array<i64: 8, 32>}]} {
    %c0 = arith.constant 0 : index
    %0 = memref.load %arg1[%c0] : memref<1xf32, #tpu.memory_space<smem>>
    %c0_0 = arith.constant 0 : index
    %c0_1 = arith.constant 0 : index
    %1 = vector.load %arg2[%c0_0, %c0_1] : memref<8x32xf32, #tpu.memory_space<vmem>>, vector<8x32xf32>
    %cst = arith.constant dense<0.000000e+00> : vector<32xf32>
    %2 = vector.multi_reduction <add>, %1, %cst [0] : vector<8x32xf32> to vector<32xf32>
    %3 = vector.shape_cast %2 : vector<32xf32> to vector<1x32xf32>
    %cst_2 = arith.constant 8.000000e+00 : f32
    %4 = vector.broadcast %cst_2 : f32 to vector<1x32xf32>
    %5 = arith.divf %3, %4 : vector<1x32xf32>
    %6 = vector.broadcast %5 : vector<1x32xf32> to vector<8x32xf32>
    %7 = arith.subf %1, %6 : vector<8x32xf32>
    %8 = arith.mulf %7, %7 : vector<8x32xf32>
    %cst_3 = arith.constant dense<0.000000e+00> : vector<32xf32>
    %9 = vector.multi_reduction <add>, %8, %cst_3 [0] : vector<8x32xf32> to vector<32xf32>
    %10 = vector.shape_cast %9 : vector<32xf32> to vector<1x32xf32>
    %cst_4 = arith.constant 8.000000e+00 : f32
    %11 = vector.broadcast %cst_4 : f32 to vector<1x32xf32>
    %12 = arith.divf %10, %11 : vector<1x32xf32>
    %cst_5 = arith.constant 9.99999974E-6 : f32
    %13 = vector.broadcast %cst_5 : f32 to vector<1x32xf32>
    %14 = arith.addf %12, %13 : vector<1x32xf32>
    %15 = math.rsqrt %14 : vector<1x32xf32>
    %c0_6 = arith.constant 0 : index
    %c0_7 = arith.constant 0 : index
    %16 = vector.load %arg3[%c0_6, %c0_7] : memref<1x32xf32, #tpu.memory_space<vmem>>, vector<1x32xf32>
    %17 = arith.mulf %15, %16 : vector<1x32xf32>
    %18 = vector.broadcast %17 : vector<1x32xf32> to vector<8x32xf32>
    %19 = arith.mulf %7, %18 : vector<8x32xf32>
    %c0_8 = arith.constant 0 : index
    %c0_9 = arith.constant 0 : index
    %20 = vector.load %arg4[%c0_8, %c0_9] : memref<1x32xf32, #tpu.memory_space<vmem>>, vector<1x32xf32>
    %21 = vector.broadcast %20 : vector<1x32xf32> to vector<8x32xf32>
    %22 = arith.addf %19, %21 : vector<8x32xf32>
    %23 = math.absf %17 : vector<1x32xf32>
    %24 = vector.broadcast %0 : f32 to vector<1x32xf32>
    %25 = arith.mulf %24, %23 : vector<1x32xf32>
    %c0_10 = arith.constant 0 : index
    %c0_11 = arith.constant 0 : index
    %26 = vector.load %arg8[%c0_10, %c0_11] : memref<8x32xf32, #tpu.memory_space<vmem>>, vector<8x32xf32>
    tpu.vector_store %arg8[%c0_10, %c0_11], %22 {strides = array<i32>} : memref<8x32xf32, #tpu.memory_space<vmem>>, vector<8x32xf32>,
    %27 = vector.broadcast %25 : vector<1x32xf32> to vector<8x32xf32>
    %28 = arith.addf %22, %27 : vector<8x32xf32>
    %c0_12 = arith.constant 0 : index
    %c0_13 = arith.constant 0 : index
    %29 = vector.load %arg9[%c0_12, %c0_13] : memref<8x32xf32, #tpu.memory_space<vmem>>, vector<8x32xf32>
    tpu.vector_store %arg9[%c0_12, %c0_13], %28 {strides = array<i32>} : memref<8x32xf32, #tpu.memory_space<vmem>>, vector<8x32xf32>,
    %30 = vector.broadcast %25 : vector<1x32xf32> to vector<8x32xf32>
    %31 = arith.subf %22, %30 : vector<8x32xf32>
    %c0_14 = arith.constant 0 : index
    %c0_15 = arith.constant 0 : index
    %32 = vector.load %arg10[%c0_14, %c0_15] : memref<8x32xf32, #tpu.memory_space<vmem>>, vector<8x32xf32>
    tpu.vector_store %arg10[%c0_14, %c0_15], %31 {strides = array<i32>} : memref<8x32xf32, #tpu.memory_space<vmem>>, vector<8x32xf32>,
    %c0_16 = arith.constant 0 : index
    %c0_17 = arith.constant 0 : index
    %33 = vector.load %arg5[%c0_16, %c0_17] : memref<32x16xf32, #tpu.memory_space<vmem>>, vector<32x16xf32>
    %cst_18 = arith.constant dense<0.000000e+00> : vector<8x16xf32>
    %34 = tpu.matmul %22, %33, %cst_18 {dimension_numbers = #tpu.dot_dimension_numbers<[1], [0], [0], [1], [0, 0, 1, 1], [], []>} : vector<8x32xf32>, vector<32x16xf32>, vector<8x16xf32> -> vector<8x16xf32>
    %c0_i32 = arith.constant 0 : i32
    %35 = arith.cmpi eq, %arg0, %c0_i32 : i32
    %36 = arith.extui %35 : i1 to i32
    %c0_i32_19 = arith.constant 0 : i32
    %37 = arith.cmpi ne, %36, %c0_i32_19 : i32
    scf.if %37 {
      %c0_22 = arith.constant 0 : index
      %c0_23 = arith.constant 0 : index
      %41 = vector.load %arg6[%c0_22, %c0_23] : memref<1x16xf32, #tpu.memory_space<vmem>>, vector<1x16xf32>
      %42 = vector.broadcast %41 : vector<1x16xf32> to vector<8x16xf32>
      %43 = arith.addf %34, %42 : vector<8x16xf32>
      %c0_24 = arith.constant 0 : index
      %c0_25 = arith.constant 0 : index
      %44 = vector.load %arg7[%c0_24, %c0_25] : memref<8x16xf32, #tpu.memory_space<vmem>>, vector<8x16xf32>
      tpu.vector_store %arg7[%c0_24, %c0_25], %43 {strides = array<i32>} : memref<8x16xf32, #tpu.memory_space<vmem>>, vector<8x16xf32>,
    } else {
    }
    %c0_i32_20 = arith.constant 0 : i32
    %38 = arith.cmpi ne, %arg0, %c0_i32_20 : i32
    %39 = arith.extui %38 : i1 to i32
    %c0_i32_21 = arith.constant 0 : i32
    %40 = arith.cmpi ne, %39, %c0_i32_21 : i32
    scf.if %40 {
      %c0_22 = arith.constant 0 : index
      %c0_23 = arith.constant 0 : index
      %41 = vector.load %arg7[%c0_22, %c0_23] : memref<8x16xf32, #tpu.memory_space<vmem>>, vector<8x16xf32>
      %42 = arith.addf %41, %34 : vector<8x16xf32>
      %c0_24 = arith.constant 0 : index
      %c0_25 = arith.constant 0 : index
      %43 = vector.load %arg7[%c0_24, %c0_25] : memref<8x16xf32, #tpu.memory_space<vmem>>, vector<8x16xf32>
      tpu.vector_store %arg7[%c0_24, %c0_25], %42 {strides = array<i32>} : memref<8x16xf32, #tpu.memory_space<vmem>>, vector<8x16xf32>,
    } else {
    }
    return
  }
  func.func @transform_0(%arg0: i32) -> i32 {
    %c0_i32 = arith.constant 0 : i32
    %c0_i32_0 = arith.constant 0 : i32
    return %c0_i32 : i32
  }
  func.func @transform_1(%arg0: i32) -> (i32, i32) {
    %c0_i32 = arith.constant 0 : i32
    %c0_i32_0 = arith.constant 0 : i32
    return %c0_i32, %arg0 : i32, i32
  }
  func.func @transform_2(%arg0: i32) -> (i32, i32) {
    %c0_i32 = arith.constant 0 : i32
    %c0_i32_0 = arith.constant 0 : i32
    return %c0_i32, %arg0 : i32, i32
  }
  func.func @transform_3(%arg0: i32) -> (i32, i32) {
    %c0_i32 = arith.constant 0 : i32
    %c0_i32_0 = arith.constant 0 : i32
    return %c0_i32, %arg0 : i32, i32
  }
  func.func @transform_4(%arg0: i32) -> (i32, i32) {
    %c0_i32 = arith.constant 0 : i32
    %c0_i32_0 = arith.constant 0 : i32
    return %arg0, %c0_i32 : i32, i32
  }
  func.func @transform_5(%arg0: i32) -> (i32, i32) {
    %c0_i32 = arith.constant 0 : i32
    %c0_i32_0 = arith.constant 0 : i32
    %c0_i32_1 = arith.constant 0 : i32
    return %c0_i32, %c0_i32_0 : i32, i32
  }
  func.func @transform_6(%arg0: i32) -> (i32, i32) {
    %c0_i32 = arith.constant 0 : i32
    %c0_i32_0 = arith.constant 0 : i32
    %c0_i32_1 = arith.constant 0 : i32
    return %c0_i32, %c0_i32_0 : i32, i32
  }
  func.func @transform_7(%arg0: i32) -> (i32, i32) {
    %c0_i32 = arith.constant 0 : i32
    %c0_i32_0 = arith.constant 0 : i32
    return %c0_i32, %arg0 : i32, i32
  }
  func.func @transform_8(%arg0: i32) -> (i32, i32) {
    %c0_i32 = arith.constant 0 : i32
    %c0_i32_0 = arith.constant 0 : i32
    return %c0_i32, %arg0 : i32, i32
  }
  func.func @transform_9(%arg0: i32) -> (i32, i32) {
    %c0_i32 = arith.constant 0 : i32
    %c0_i32_0 = arith.constant 0 : i32
    return %c0_i32, %arg0 : i32, i32
  }
}

</mosaic_0001>

<llo_original>
// kernel: tpu_custom_call.1
$region0: #{tpu_custom_call.1}
  #allocation0 [shape = 'u32[]', space=smem, size = 0x4, offset = 0x4, fixed_abs, tag = 'smem constant byte address 0x4 - core index']
  #allocation1 [shape = 'u32[144,128]{1,0:T(1,128)}', space=vmem, size = 0x12000, scoped, tag = 'internal scratch']
  #allocation2 [shape = 'f32[1]{0:T(128)S(6)}', space=smem, size = 0x200, scoped, tag = 'scoped memory for tpu_custom_call.1']
  %s0 = inlined_call_operand.<no memory space> [shape: f32[1], index: 0, kind: input, shape index: {}]
  %s1 = inlined_call_operand.vmem [shape: f32[8,32], index: 1, kind: input, shape index: {}]
  %s2 = inlined_call_operand.vmem [shape: f32[1,32], index: 2, kind: input, shape index: {}]
  %s3 = inlined_call_operand.vmem [shape: f32[1,32], index: 3, kind: input, shape index: {}]
  %s4 = inlined_call_operand.vmem [shape: f32[32,16], index: 4, kind: input, shape index: {}]
  %s5 = inlined_call_operand.vmem [shape: f32[1,16], index: 5, kind: input, shape index: {}]
  %s6 = inlined_call_operand.hbm [shape: f32[8,16], index: 6, kind: output, shape index: {0}]
  %s7 = inlined_call_operand.hbm [shape: f32[8,32], index: 7, kind: output, shape index: {1}]
  %s8 = inlined_call_operand.hbm [shape: f32[8,32], index: 8, kind: output, shape index: {2}]
  %s9 = inlined_call_operand.hbm [shape: f32[8,32], index: 9, kind: output, shape index: {3}]
  %10 = xla_tuple %s6, %s7, %s8, %s9
  %s11 = sld [smem:[#allocation0]]
  $region66: #{tpu_custom_call.1} parent=0
    _
  %s13 = ssub.s32 1, %s11
  %s14 = scalar_select 0, %s13, %s11
  %15 = sst [smem:[#allocation2]] %s0
  $region1: #{tpu_custom_call.1} parent=0
    #allocation3 [shape = 'u8[4096]{0}', space=vmem, size = 0x1000, scoped, tag = 'output window, operand 0, single buffered']
    #allocation4 [shape = 's32[1]{0}', space=sflag, size = 0x4, scoped, tag = 'scoped memory for tpu_custom_call.1']
    #allocation5 [shape = 'u8[4096]{0}', space=vmem, size = 0x1000, scoped, tag = 'output window, operand 1, single buffered']
    #allocation6 [shape = 's32[1]{0}', space=sflag, size = 0x4, scoped, tag = 'scoped memory for tpu_custom_call.1']
    #allocation7 [shape = 'u8[4096]{0}', space=vmem, size = 0x1000, scoped, tag = 'output window, operand 2, single buffered']
    #allocation8 [shape = 'u8[4096]{0}', space=vmem, size = 0x1000, scoped, tag = 'output window, operand 3, single buffered']
    #allocation9 [shape = 's32[1]{0}', space=sflag, size = 0x4, scoped, tag = 'scoped memory for tpu_custom_call.1']
    %16 = vsyncpa [#allocation4], 0
    %17 = vsyncpa [#allocation6], 0
    %18 = vsyncpa [#allocation9], 0
    // Predicated region
    $region2: #{tpu_custom_call.1} parent=1 // pred_check
      _
    $region3: #{tpu_custom_call.1} parent=1 // pred_check_branch
      %20 = sbr.rel (0) target = $region5
    $region4: #{tpu_custom_call.1} parent=1 // pred_region
      _
    $region5: #{tpu_custom_call.1} parent=1 // pred_fallthru
      _
    // Predicated region
    $region6: #{tpu_custom_call.1} parent=1 // pred_check
      _
    $region7: #{tpu_custom_call.1} parent=1 // pred_check_branch
      %22 = sbr.rel (0) target = $region9
    $region8: #{tpu_custom_call.1} parent=1 // pred_region
      _
    $region9: #{tpu_custom_call.1} parent=1 // pred_fallthru
      _
    // Predicated region
    $region10: #{tpu_custom_call.1} parent=1 // pred_check
      _
    $region11: #{tpu_custom_call.1} parent=1 // pred_check_branch
      %24 = sbr.rel (0) target = $region13
    $region12: #{tpu_custom_call.1} parent=1 // pred_region
      _
    $region13: #{tpu_custom_call.1} parent=1 // pred_fallthru
      _
    // Predicated region
    $region14: #{tpu_custom_call.1} parent=1 // pred_check
      _
    $region15: #{tpu_custom_call.1} parent=1 // pred_check_branch
      %26 = sbr.rel (0) target = $region17
    $region16: #{tpu_custom_call.1} parent=1 // pred_region
      _
    $region17: #{tpu_custom_call.1} parent=1 // pred_fallthru
      _
    // Predicated region
    $region18: #{tpu_custom_call.1} parent=1 // pred_check
      _
    $region19: #{tpu_custom_call.1} parent=1 // pred_check_branch
      %28 = sbr.rel (0) target = $region21
    $region20: #{tpu_custom_call.1} parent=1 // pred_region
      _
    $region21: #{tpu_custom_call.1} parent=1 // pred_fallthru
      _
    // Predicated region
    $region22: #{tpu_custom_call.1} parent=1 // pred_check
      _
    $region23: #{tpu_custom_call.1} parent=1 // pred_check_branch
      %30 = sbr.rel (0) target = $region25
    $region24: #{tpu_custom_call.1} parent=1 // pred_region
      _
    $region25: #{tpu_custom_call.1} parent=1 // pred_fallthru
      _
    %s31 = sld [smem:[#allocation2]]
    %v32 = vld [vmem:[%s1] sm:$0xff]
    %vm33 = vcmask 261120
    %v34 = vsel %vm33, %v32, 0.0
    %v35 = vrot.slane %v34, 4
    %v36 = vadd.f32 %v34, %v35
    %v37 = vrot.slane %v36, 2
    %v38 = vadd.f32 %v36, %v37
    %v39 = vrot.slane %v38, 1
    %v40 = vadd.f32 %v38, %v39
    %v41 = vrcp.pop 8.0
    %v42 = vmul.f32 %v40, %v41
    %v43 = vsub.f32 %v32, %v42
    %v44 = vmul.f32 %v43, %v43
    %v45 = vsel %vm33, %v44, 0.0
    %v46 = vrot.slane %v45, 4
    %v47 = vadd.f32 %v45, %v46
    %v48 = vrot.slane %v47, 2
    %v49 = vadd.f32 %v47, %v48
    %v50 = vrot.slane %v49, 1
    %v51 = vadd.f32 %v49, %v50
    %v52 = vmul.f32 %v51, %v41
    %v53 = vadd.f32 %v52, 1e-05
    %v54 = vrsqrt.pop %v53
    %v55 = vld [vmem:[%s2] sm:$0x1]
    %v56 = vmul.f32 %v54, %v55
    %v57 = vlaneseq
    %v58 = vshrl.u32 %v57, 7
    %v59 = vsub.s32 0, %v58
    %v60 = vrot.slane %v56, %v59
    %v61 = vmul.f32 %v43, %v60
    %v62 = vld [vmem:[%s3] sm:$0x1]
    %v64 = vlaneseq
    %v65 = vshrl.u32 %v64, 7
    %v66 = vsub.s32 0, %v65
    %v67 = vrot.slane %v62, %v66
    %v69 = vadd.f32 %v61, %v67
    %v70 = vand.u32 2147483647, %v56
    %v71 = vstv %s31
    %v72 = vmul.f32 %v71, %v70
    %73 = vst.msk [vmem:[#allocation5] sm:$0xff] %vm33, %v69
    %v74 = vlaneseq
    %v75 = vshrl.u32 %v74, 7
    %v76 = vsub.s32 0, %v75
    %v77 = vrot.slane %v72, %v76
    %v78 = vadd.f32 %v69, %v77
    %79 = vst.msk [vmem:[#allocation7] sm:$0xff] %vm33, %v78
    %v80 = vsub.f32 %v69, %v77
    %81 = vst.msk [vmem:[#allocation8] sm:$0xff] %vm33, %v80
    %v82 = vld [vmem:[%s4] sm:$0xff]
    %v83 = vld [vmem:[%s4 + $0x8] sm:$0xff]
    %v84 = vld [vmem:[%s4 + $0x10] sm:$0xff]
    %v85 = vld [vmem:[%s4 + $0x18] sm:$0xff]
    %v87 = vsel %vm33, %v69, 0
    %89 = vmatprep.subr.mxu0 0.0
    %90 = vmatpush1.msra.mxu0 0.0
    %91 = vmatprep.subr.mxu0 0.0
    %92 = vmatpush1.msra.mxu0 0.0
    %93 = vmatprep.subr.mxu0 0.0
    %94 = vmatpush1.msra.mxu0 0.0
    %95 = vmatprep.subr.mxu0 0.0
    %96 = vmatpush1.msra.mxu0 0.0
    %97 = vmatprep.subr.mxu0 0.0
    %98 = vmatpush1.msra.mxu0 0.0
    %99 = vmatprep.subr.mxu0 0.0
    %100 = vmatpush1.msra.mxu0 0.0
    %101 = vmatprep.subr.mxu0 0.0
    %102 = vmatpush1.msra.mxu0 0.0
    %103 = vmatprep.subr.mxu0 0.0
    %104 = vmatpush1.msra.mxu0 0.0
    %105 = vmatprep.subr.mxu0 0.0
    %106 = vmatpush1.msra.mxu0 0.0
    %107 = vmatprep.subr.mxu0 0.0
    %108 = vmatpush1.msra.mxu0 0.0
    %109 = vmatprep.subr.mxu0 0.0
    %110 = vmatpush1.msra.mxu0 0.0
    %111 = vmatprep.subr.mxu0 0.0
    %112 = vmatpush1.msra.mxu0 0.0
    %113 = vmatprep.subr.mxu0 0.0
    %114 = vmatpush1.msra.mxu0 %v85
    %115 = vmatprep.subr.mxu0 0.0
    %116 = vmatpush1.msra.mxu0 %v84
    %117 = vmatprep.subr.mxu0 0.0
    %118 = vmatpush1.msra.mxu0 %v83
    %119 = vmatprep.subr.mxu0 0.0
    %120 = vmatpush1.msra.mxu0 %v82
    %121 = vmatprep.subr.mxu0 0.0
    %122 = vmatpush2.msra.mxu0 0.0
    %123 = vmatprep.subr.mxu0 0.0
    %124 = vmatpush2.msra.mxu0 0.0
    %125 = vmatprep.subr.mxu0 0.0
    %126 = vmatpush2.msra.mxu0 0.0
    %127 = vmatprep.subr.mxu0 0.0
    %128 = vmatpush2.msra.mxu0 0.0
    %129 = vmatprep.subr.mxu0 0.0
    %130 = vmatpush2.msra.mxu0 0.0
    %131 = vmatprep.subr.mxu0 0.0
    %132 = vmatpush2.msra.mxu0 0.0
    %133 = vmatprep.subr.mxu0 0.0
    %134 = vmatpush2.msra.mxu0 0.0
    %135 = vmatprep.subr.mxu0 0.0
    %136 = vmatpush2.msra.mxu0 0.0
    %137 = vmatprep.subr.mxu0 0.0
    %138 = vmatpush2.msra.mxu0 0.0
    %139 = vmatprep.subr.mxu0 0.0
    %140 = vmatpush2.msra.mxu0 0.0
    %141 = vmatprep.subr.mxu0 0.0
    %142 = vmatpush2.msra.mxu0 0.0
    %143 = vmatprep.subr.mxu0 0.0
    %144 = vmatpush2.msra.mxu0 0.0
    %145 = vmatprep.subr.mxu0 0.0
    %146 = vmatpush2.msra.mxu0 0.0
    %147 = vmatprep.subr.mxu0 0.0
    %148 = vmatpush2.msra.mxu0 0.0
    %149 = vmatprep.subr.mxu0 0.0
    %150 = vmatpush2.msra.mxu0 0.0
    %151 = vmatprep.subr.mxu0 0.0
    %152 = vmatpush2.msra.mxu0 0.0
    %153 = vmatprep.mubr.f32.mxu0 0.0
    %154 = vmatmul.mubr.f32.gmra.mxu0 %v87
    %v155 = vpop.f32.mrf.mxu0
    %v156 = vadd.f32 0.0, %v155
    %v157 = vpop.f32.mrf.mxu0
    %158 = vdwg.mxu0
    %p159 = scmp.eq.s32.totalorder 0, 0
    // Predicated region
    $region26: #{tpu_custom_call.1} parent=1 // pred_check
      %p160 = pneg %p159
    $region27: #{tpu_custom_call.1} parent=1 // pred_check_branch
      %162 = sbr.rel (%p160) target = $region29
    $region28: #{tpu_custom_call.1} parent=1 // pred_region
      %v163 = vld [vmem:[%s5] sm:$0x1]
      %v165 = vlaneseq
      %v166 = vshrl.u32 %v165, 7
      %v167 = vsub.s32 0, %v166
      %v168 = vrot.slane %v163, %v167
      %v170 = vadd.f32 %v156, %v168
      %vm171 = vcmask 130048
      %172 = vst.msk [vmem:[#allocation3] sm:$0xff] %vm171, %v170
    $region29: #{tpu_custom_call.1} parent=1 // pred_fallthru
      _
    %p173 = scmp.ne.s32.totalorder 0, 0
    // Predicated region
    $region30: #{tpu_custom_call.1} parent=1 // pred_check
      %p174 = pneg %p173
    $region31: #{tpu_custom_call.1} parent=1 // pred_check_branch
      %176 = sbr.rel (%p174) target = $region33
    $region32: #{tpu_custom_call.1} parent=1 // pred_region
      %v177 = vld [vmem:[#allocation3] sm:$0xff]
      %v178 = vadd.f32 %v177, %v156
      %vm179 = vcmask 130048
      %180 = vst.msk [vmem:[#allocation3] sm:$0xff] %vm179, %v178
    $region33: #{tpu_custom_call.1} parent=1 // pred_fallthru
      _
    // Predicated region
    $region34: #{tpu_custom_call.1} parent=1 // pred_check
      _
    $region35: #{tpu_custom_call.1} parent=1 // pred_check_branch
      %182 = sbr.rel (0) target = $region37
    $region36: #{tpu_custom_call.1} parent=1 // pred_region
      %s184 = ssub.s32 128, 128
      %185 = vsyncadd [#allocation4], %s184
      %s187 = sshll.u32 [#allocation3], 4
      %s188 = int_to_ptr.vmem [resolvable:$true] %s187
      %190 = dma.vmem_to_hbm [thread:$0]  %s188, 128, %s6, [#allocation4]
    $region37: #{tpu_custom_call.1} parent=1 // pred_fallthru
      _
    // Predicated region
    $region38: #{tpu_custom_call.1} parent=1 // pred_check
      _
    $region39: #{tpu_custom_call.1} parent=1 // pred_check_branch
      %192 = sbr.rel (0) target = $region41
    $region40: #{tpu_custom_call.1} parent=1 // pred_region
      %s194 = ssub.s32 128, 128
      %195 = vsyncadd [#allocation6], %s194
      %s197 = sshll.u32 [#allocation5], 4
      %s198 = int_to_ptr.vmem [resolvable:$true] %s197
      %200 = dma.vmem_to_hbm [thread:$0]  %s198, 128, %s7, [#allocation6]
    $region41: #{tpu_custom_call.1} parent=1 // pred_fallthru
      _
    // Predicated region
    $region42: #{tpu_custom_call.1} parent=1 // pred_check
      _
    $region43: #{tpu_custom_call.1} parent=1 // pred_check_branch
      %202 = sbr.rel (0) target = $region45
    $region44: #{tpu_custom_call.1} parent=1 // pred_region
      %s204 = ssub.s32 128, 128
      %205 = vsyncadd [#allocation6], %s204
      %s207 = sshll.u32 [#allocation7], 4
      %s208 = int_to_ptr.vmem [resolvable:$true] %s207
      %210 = dma.vmem_to_hbm [thread:$0]  %s208, 128, %s8, [#allocation6]
    $region45: #{tpu_custom_call.1} parent=1 // pred_fallthru
      _
    // Predicated region
    $region46: #{tpu_custom_call.1} parent=1 // pred_check
      _
    $region47: #{tpu_custom_call.1} parent=1 // pred_check_branch
      %212 = sbr.rel (0) target = $region49
    $region48: #{tpu_custom_call.1} parent=1 // pred_region
      %s214 = ssub.s32 128, 128
      %215 = vsyncadd [#allocation9], %s214
      %s217 = sshll.u32 [#allocation8], 4
      %s218 = int_to_ptr.vmem [resolvable:$true] %s217
      %220 = dma.vmem_to_hbm [thread:$0]  %s218, 128, %s9, [#allocation9]
    $region49: #{tpu_custom_call.1} parent=1 // pred_fallthru
      _
    // Predicated region
    $region50: #{tpu_custom_call.1} parent=1 // pred_check
      _
    $region51: #{tpu_custom_call.1} parent=1 // pred_check_branch
      %222 = sbr.rel (0) target = $region53
    $region52: #{tpu_custom_call.1} parent=1 // pred_region
      %223 = dma.done [#allocation4], 128
    $region53: #{tpu_custom_call.1} parent=1 // pred_fallthru
      _
    // Predicated region
    $region54: #{tpu_custom_call.1} parent=1 // pred_check
      _
    $region55: #{tpu_custom_call.1} parent=1 // pred_check_branch
      %225 = sbr.rel (0) target = $region57
    $region56: #{tpu_custom_call.1} parent=1 // pred_region
      %226 = dma.done [#allocation6], 128
    $region57: #{tpu_custom_call.1} parent=1 // pred_fallthru
      _
    // Predicated region
    $region58: #{tpu_custom_call.1} parent=1 // pred_check
      _
    $region59: #{tpu_custom_call.1} parent=1 // pred_check_branch
      %228 = sbr.rel (0) target = $region61
    $region60: #{tpu_custom_call.1} parent=1 // pred_region
      %229 = dma.done [#allocation6], 128
    $region61: #{tpu_custom_call.1} parent=1 // pred_fallthru
      _
    // Predicated region
    $region62: #{tpu_custom_call.1} parent=1 // pred_check
      _
    $region63: #{tpu_custom_call.1} parent=1 // pred_check_branch
      %231 = sbr.rel (0) target = $region65
    $region64: #{tpu_custom_call.1} parent=1 // pred_region
      %232 = dma.done [#allocation9], 128
    $region65: #{tpu_custom_call.1} parent=1 // pred_fallthru
      _
    %233 = vsyncpa [#allocation4], 1
    %234 = vsyncpa [#allocation6], 1
    %235 = vsyncpa [#allocation9], 1

</llo_original>
